<compile_context>
chip_gen: v5e
topology: v5e:2x2
jax: 0.10.0
libtpu: 0.0.40
codegen_flags: <defaults>
</compile_context>

<pallas_src>
import jax
import jax.numpy as jnp
from jax.experimental import pallas as pl
from jax.experimental.pallas import tpu as pltpu


def _linear_kernel(x_ref, w_ref, b_ref, o_ref):
    # x_ref: (tm, K)  w_ref: (K, N)  b_ref: (1, N) f32  o_ref: (tm, N)
    acc = jnp.dot(x_ref[...], w_ref[...], preferred_element_type=jnp.float32)
    o_ref[...] = (acc + b_ref[...]).astype(o_ref.dtype)


def _linear_pallas(x2, wt, b2, tm):
    """(M, K) @ (K, N) + b, tiled over M with a ragged (cdiv) grid."""
    M, K = x2.shape
    N = wt.shape[1]
    return pl.pallas_call(
        _linear_kernel,
        out_shape=jax.ShapeDtypeStruct((M, N), x2.dtype),
        grid_spec=pltpu.PrefetchScalarGridSpec(
            num_scalar_prefetch=0,
            grid=(pl.cdiv(M, tm),),
            in_specs=[
                pl.BlockSpec((tm, K), lambda i: (i, 0)),   # x tile (streamed)
                pl.BlockSpec((K, N), lambda i: (0, 0)),    # W (resident)
                pl.BlockSpec((1, N), lambda i: (0, 0)),    # bias (resident, f32)
            ],
            out_specs=pl.BlockSpec((tm, N), lambda i: (i, 0)),
        ),
        compiler_params=pltpu.CompilerParams(
            dimension_semantics=("parallel",)),
    )(x2, wt, b2)


def token_embedding(x, weight, bias, *, tm_packed=512):
    """Forward of TokenEmbedding (nn.Linear(input_dim, embed_dim) + Identity).

    x: (..., input_dim); weight: (embed_dim, input_dim) [PyTorch layout];
    bias: (embed_dim,).  Returns (..., embed_dim).
    """
    *lead, in_dim = x.shape
    embed_dim = weight.shape[0]
    M = 1
    for d in lead:
        M *= d

    x2 = x.reshape(M, in_dim)
    wt = jnp.asarray(weight).T                      # (in_dim, embed_dim)
    b_f32 = jnp.asarray(bias).astype(jnp.float32)   # pre-cast once (no per-tile cast)

    if in_dim < 128 and 128 % in_dim == 0:
        # ---- lane-packed path: pack `pack` logical rows per 128-wide row ----
        pack = 128 // in_dim
        row_mult = pack * 8                         # packed rows sublane-aligned
        M_pad = ((M + row_mult - 1) // row_mult) * row_mult
        if M_pad != M:
            # Tiny pad (< pack*8 rows), NOT a pad all the way to the M tile.
            x2 = jnp.pad(x2, ((0, M_pad - M), (0, 0)))
        M_p = M_pad // pack
        K = pack * in_dim                           # == 128
        N = pack * embed_dim
        xp = x2.reshape(M_p, K)                     # contiguous -> free reshape
        # Block-diagonal weight: diag blocks are W^T, so each packed row's
        # 8 logical rows hit their own copy of W^T.
        w_big = jnp.kron(jnp.eye(pack, dtype=wt.dtype), wt)     # (128, N)
        b_big = jnp.tile(b_f32, pack).reshape(1, N)              # (1, N)
        tm = min(tm_packed, M_p)                    # both multiples of 8
        out_p = _linear_pallas(xp, w_big, b_big, tm)             # (M_p, N)
        out2 = out_p.reshape(M_pad, embed_dim)[:M]
    else:
        # ---- generic path (in_dim does not divide 128): plain GEMM, big tm ----
        M_pad = ((M + 7) // 8) * 8
        if M_pad != M:
            x2 = jnp.pad(x2, ((0, M_pad - M), (0, 0)))
        tm = min(8 * tm_packed, M_pad)
        tm = max(8, (tm // 8) * 8)
        out2 = _linear_pallas(x2, wt, b_f32.reshape(1, embed_dim), tm)[:M]

    return out2.reshape(*lead, embed_dim)


if __name__ == "__main__":
    key = jax.random.PRNGKey(0)
    k_x, k_w, k_b, k_x2 = jax.random.split(key, 4)

    batch, nodes, seq = 2, 4, 8
    input_dim, embed_dim = 16, 32

    x = jax.random.normal(k_x, (batch, nodes, seq, input_dim), dtype=jnp.float32)
    # Deterministic params (PyTorch Linear layout: (embed_dim, input_dim)).
    bound = 1.0 / (input_dim ** 0.5)
    weight = jax.random.uniform(k_w, (embed_dim, input_dim),
                                minval=-bound, maxval=bound, dtype=jnp.float32)
    bias = jax.random.uniform(k_b, (embed_dim,),
                              minval=-bound, maxval=bound, dtype=jnp.float32)

    y = token_embedding(x, weight, bias)
    jax.block_until_ready(y)

    y_ref = x @ weight.T + bias
    assert y.shape == (batch, nodes, seq, embed_dim)
    assert jnp.allclose(y, y_ref, atol=1e-5, rtol=1e-5)

    # Ragged-M case: exercises the small pad-to-(pack*8) boundary and slicing.
    x_r = jax.random.normal(k_x2, (3, 5, 7, input_dim), dtype=jnp.float32)
    y_r = token_embedding(x_r, weight, bias)
    jax.block_until_ready(y_r)
    y_r_ref = x_r @ weight.T + bias
    assert y_r.shape == (3, 5, 7, embed_dim)
    assert jnp.allclose(y_r, y_r_ref, atol=1e-5, rtol=1e-5)

    print("KERNEL_OK")
</pallas_src>

<mosaic_0001>
module attributes {stable_mosaic.version = 11 : i64} {
  func.func @_linear_kernel(%arg0: i32, %arg1: memref<8x128xf32, #tpu.memory_space<vmem>>, %arg2: memref<128x256xf32, #tpu.memory_space<vmem>>, %arg3: memref<1x256xf32, #tpu.memory_space<vmem>>, %arg4: memref<8x256xf32, #tpu.memory_space<vmem>>) attributes {dimension_semantics = [#tpu.dimension_semantics<parallel>], iteration_bounds = array<i64: 1>, scalar_prefetch = 0 : i64, scratch_operands = 0 : i64, tpu.core_type = #tpu.core_type<tc>, window_params = [{transform_indices = @transform_0, window_bounds = array<i64: 8, 128>}, {pipeline_mode = #tpu.pipeline_mode<synchronous>, transform_indices = @transform_1, window_bounds = array<i64: 128, 256>}, {pipeline_mode = #tpu.pipeline_mode<synchronous>, transform_indices = @transform_2, window_bounds = array<i64: 1, 256>}, {transform_indices = @transform_3, window_bounds = array<i64: 8, 256>}]} {
    %c0 = arith.constant 0 : index
    %c0_0 = arith.constant 0 : index
    %0 = vector.load %arg1[%c0, %c0_0] : memref<8x128xf32, #tpu.memory_space<vmem>>, vector<8x128xf32>
    %c0_1 = arith.constant 0 : index
    %c0_2 = arith.constant 0 : index
    %1 = vector.load %arg2[%c0_1, %c0_2] : memref<128x256xf32, #tpu.memory_space<vmem>>, vector<128x256xf32>
    %cst = arith.constant dense<0.000000e+00> : vector<8x256xf32>
    %2 = tpu.matmul %0, %1, %cst {dimension_numbers = #tpu.dot_dimension_numbers<[1], [0], [0], [1], [0, 0, 1, 1], [], []>} : vector<8x128xf32>, vector<128x256xf32>, vector<8x256xf32> -> vector<8x256xf32>
    %c0_3 = arith.constant 0 : index
    %c0_4 = arith.constant 0 : index
    %3 = vector.load %arg3[%c0_3, %c0_4] : memref<1x256xf32, #tpu.memory_space<vmem>>, vector<1x256xf32>
    %4 = vector.broadcast %3 : vector<1x256xf32> to vector<8x256xf32>
    %5 = arith.addf %2, %4 : vector<8x256xf32>
    %c0_5 = arith.constant 0 : index
    %c0_6 = arith.constant 0 : index
    %6 = vector.load %arg4[%c0_5, %c0_6] : memref<8x256xf32, #tpu.memory_space<vmem>>, vector<8x256xf32>
    tpu.vector_store %arg4[%c0_5, %c0_6], %5 {strides = array<i32>} : memref<8x256xf32, #tpu.memory_space<vmem>>, vector<8x256xf32>,
    return
  }
  func.func @transform_0(%arg0: i32) -> (i32, i32) {
    %c0_i32 = arith.constant 0 : i32
    %c0_i32_0 = arith.constant 0 : i32
    return %arg0, %c0_i32 : i32, i32
  }
  func.func @transform_1(%arg0: i32) -> (i32, i32) {
    %c0_i32 = arith.constant 0 : i32
    %c0_i32_0 = arith.constant 0 : i32
    %c0_i32_1 = arith.constant 0 : i32
    return %c0_i32, %c0_i32_0 : i32, i32
  }
  func.func @transform_2(%arg0: i32) -> (i32, i32) {
    %c0_i32 = arith.constant 0 : i32
    %c0_i32_0 = arith.constant 0 : i32
    %c0_i32_1 = arith.constant 0 : i32
    return %c0_i32, %c0_i32_0 : i32, i32
  }
  func.func @transform_3(%arg0: i32) -> (i32, i32) {
    %c0_i32 = arith.constant 0 : i32
    %c0_i32_0 = arith.constant 0 : i32
    return %arg0, %c0_i32 : i32, i32
  }
}

</mosaic_0001>

<llo_original>
// kernel: tpu_custom_call.1
$region0: #{tpu_custom_call.1}
  #allocation0 [shape = 'u32[]', space=smem, size = 0x4, offset = 0x4, fixed_abs, tag = 'smem constant byte address 0x4 - core index']
  #allocation1 [shape = 'u32[72,128]{1,0:T(1,128)}', space=vmem, size = 0x9000, scoped, tag = 'internal scratch']
  %s0 = inlined_call_operand.hbm [shape: f32[8,128], index: 0, kind: input, shape index: {}]
  %s1 = inlined_call_operand.hbm [shape: f32[128,256], index: 1, kind: input, shape index: {}]
  %s2 = inlined_call_operand.hbm [shape: f32[1,256], index: 2, kind: input, shape index: {}]
  %s3 = inlined_call_operand.hbm [shape: f32[8,256], index: 3, kind: output, shape index: {}]
  %s4 = sld [smem:[#allocation0]]
  $region34: #{tpu_custom_call.1} parent=0
    _
  %s6 = ssub.s32 1, %s4
  %s7 = scalar_select 0, %s6, %s4
  $region1: #{tpu_custom_call.1} parent=0
    #allocation2 [shape = 'u8[4096]{0}', space=vmem, size = 0x1000, scoped, tag = 'input window, operand 0, single buffered']
    #allocation3 [shape = 's32[1]{0}', space=sflag, size = 0x4, scoped, tag = 'scoped memory for tpu_custom_call.1']
    #allocation4 [shape = 's32[1]{0}', space=sflag, size = 0x4, scoped, tag = 'scoped memory for tpu_custom_call.1']
    #allocation5 [shape = 'u8[131072]{0}', space=vmem, size = 0x20000, scoped, tag = 'input window, operand 1, single buffered']
    #allocation6 [shape = 's32[1]{0}', space=sflag, size = 0x4, scoped, tag = 'scoped memory for tpu_custom_call.1']
    #allocation7 [shape = 'u8[1024]{0}', space=vmem, size = 0x400, scoped, tag = 'input window, operand 2, single buffered']
    #allocation8 [shape = 'u8[8192]{0}', space=vmem, size = 0x2000, scoped, tag = 'output window, operand 0, single buffered']
    %8 = vsyncpa [#allocation3], 0
    %9 = vsyncpa [#allocation6], 0
    %10 = vsyncpa [#allocation4], 0
    // Predicated region
    $region2: #{tpu_custom_call.1} parent=1 // pred_check
      _
    $region3: #{tpu_custom_call.1} parent=1 // pred_check_branch
      %12 = sbr.rel (0) target = $region5
    $region4: #{tpu_custom_call.1} parent=1 // pred_region
      %14 = vsyncadd [#allocation3], 0
      %s16 = sshll.u32 %s0, 4
      %s17 = int_to_ptr.hbm [resolvable:$true] %s16
      %s18 = sshll.u32 [#allocation2], 4
      %s19 = int_to_ptr.vmem [resolvable:$true] %s18
      %21 = dma.hbm_to_vmem [thread:$0]  %s17, 128, %s19, [#allocation3]
    $region5: #{tpu_custom_call.1} parent=1 // pred_fallthru
      _
    // Predicated region
    $region6: #{tpu_custom_call.1} parent=1 // pred_check
      _
    $region7: #{tpu_custom_call.1} parent=1 // pred_check_branch
      %23 = sbr.rel (0) target = $region9
    $region8: #{tpu_custom_call.1} parent=1 // pred_region
      %25 = vsyncadd [#allocation6], 0
      %s26 = sshll.u32 %s1, 4
      %s27 = int_to_ptr.hbm [resolvable:$true] %s26
      %s28 = sshll.u32 [#allocation5], 4
      %s29 = int_to_ptr.vmem [resolvable:$true] %s28
      %34 = dma.hbm_to_vmem [thread:$0]  %s27, 4096, %s29, [#allocation6], 256, 256, 16
    $region9: #{tpu_custom_call.1} parent=1 // pred_fallthru
      _
    // Predicated region
    $region10: #{tpu_custom_call.1} parent=1 // pred_check
      _
    $region11: #{tpu_custom_call.1} parent=1 // pred_check_branch
      %36 = sbr.rel (0) target = $region13
    $region12: #{tpu_custom_call.1} parent=1 // pred_region
      %38 = vsyncadd [#allocation6], 0
      %s40 = sshll.u32 %s2, 4
      %s41 = int_to_ptr.hbm [resolvable:$true] %s40
      %s42 = sshll.u32 [#allocation7], 4
      %s43 = int_to_ptr.vmem [resolvable:$true] %s42
      %45 = dma.hbm_to_vmem [thread:$0]  %s41, 32, %s43, [#allocation6]
    $region13: #{tpu_custom_call.1} parent=1 // pred_fallthru
      _
    // Predicated region
    $region14: #{tpu_custom_call.1} parent=1 // pred_check
      _
    $region15: #{tpu_custom_call.1} parent=1 // pred_check_branch
      %47 = sbr.rel (0) target = $region17
    $region16: #{tpu_custom_call.1} parent=1 // pred_region
      %49 = dma.done [#allocation3], 128
    $region17: #{tpu_custom_call.1} parent=1 // pred_fallthru
      _
    // Predicated region
    $region18: #{tpu_custom_call.1} parent=1 // pred_check
      _
    $region19: #{tpu_custom_call.1} parent=1 // pred_check_branch
      %51 = sbr.rel (0) target = $region21
    $region20: #{tpu_custom_call.1} parent=1 // pred_region
      %53 = dma.done [#allocation6], 4096
    $region21: #{tpu_custom_call.1} parent=1 // pred_fallthru
      _
    // Predicated region
    $region22: #{tpu_custom_call.1} parent=1 // pred_check
      _
    $region23: #{tpu_custom_call.1} parent=1 // pred_check_branch
      %55 = sbr.rel (0) target = $region25
    $region24: #{tpu_custom_call.1} parent=1 // pred_region
      %57 = dma.done [#allocation6], 32
    $region25: #{tpu_custom_call.1} parent=1 // pred_fallthru
      _
    %v58 = vld [vmem:[#allocation2] sm:$0xff]
    %v59 = vld [vmem:[#allocation5] sm:$0xff]
    %v60 = vld [vmem:[#allocation5 + $0x8] sm:$0xff]
    %v61 = vld [vmem:[#allocation5 + $0x10] sm:$0xff]
    %v62 = vld [vmem:[#allocation5 + $0x18] sm:$0xff]
    %v63 = vld [vmem:[#allocation5 + $0x20] sm:$0xff]
    %v64 = vld [vmem:[#allocation5 + $0x28] sm:$0xff]
    %v65 = vld [vmem:[#allocation5 + $0x30] sm:$0xff]
    %v66 = vld [vmem:[#allocation5 + $0x38] sm:$0xff]
    %v67 = vld [vmem:[#allocation5 + $0x40] sm:$0xff]
    %v68 = vld [vmem:[#allocation5 + $0x48] sm:$0xff]
    %v69 = vld [vmem:[#allocation5 + $0x50] sm:$0xff]
    %v70 = vld [vmem:[#allocation5 + $0x58] sm:$0xff]
    %v71 = vld [vmem:[#allocation5 + $0x60] sm:$0xff]
    %v72 = vld [vmem:[#allocation5 + $0x68] sm:$0xff]
    %v73 = vld [vmem:[#allocation5 + $0x70] sm:$0xff]
    %v74 = vld [vmem:[#allocation5 + $0x78] sm:$0xff]
    %v75 = vld [vmem:[#allocation5 + $0x80] sm:$0xff]
    %v76 = vld [vmem:[#allocation5 + $0x88] sm:$0xff]
    %v77 = vld [vmem:[#allocation5 + $0x90] sm:$0xff]
    %v78 = vld [vmem:[#allocation5 + $0x98] sm:$0xff]
    %v79 = vld [vmem:[#allocation5 + $0xa0] sm:$0xff]
    %v80 = vld [vmem:[#allocation5 + $0xa8] sm:$0xff]
    %v81 = vld [vmem:[#allocation5 + $0xb0] sm:$0xff]
    %v82 = vld [vmem:[#allocation5 + $0xb8] sm:$0xff]
    %v83 = vld [vmem:[#allocation5 + $0xc0] sm:$0xff]
    %v84 = vld [vmem:[#allocation5 + $0xc8] sm:$0xff]
    %v85 = vld [vmem:[#allocation5 + $0xd0] sm:$0xff]
    %v86 = vld [vmem:[#allocation5 + $0xd8] sm:$0xff]
    %v87 = vld [vmem:[#allocation5 + $0xe0] sm:$0xff]
    %v88 = vld [vmem:[#allocation5 + $0xe8] sm:$0xff]
    %v89 = vld [vmem:[#allocation5 + $0xf0] sm:$0xff]
    %v90 = vld [vmem:[#allocation5 + $0xf8] sm:$0xff]
    %v91 = vld [vmem:[#allocation7] sm:$0x3]
    %v93 = vperm.slane %v91, 0
    %v94 = vperm.slane %v91, 1
    %97 = vmatpush.msra.mxu0 %v89
    %98 = vmatpush.msra.mxu0 %v87
    %99 = vmatpush.msra.mxu0 %v85
    %100 = vmatpush.msra.mxu0 %v83
    %101 = vmatpush.msra.mxu0 %v81
    %102 = vmatpush.msra.mxu0 %v79
    %103 = vmatpush.msra.mxu0 %v77
    %104 = vmatpush.msra.mxu0 %v75
    %105 = vmatpush.msra.mxu0 %v73
    %106 = vmatpush.msra.mxu0 %v71
    %107 = vmatpush.msra.mxu0 %v69
    %108 = vmatpush.msra.mxu0 %v67
    %109 = vmatpush.msra.mxu0 %v65
    %110 = vmatpush.msra.mxu0 %v63
    %111 = vmatpush.msra.mxu0 %v61
    %112 = vmatpush.msra.mxu0 %v59
    %113 = vmatmul.f32.gmra.mxu0 %v58
    %v114 = vpop.f32.mrf.mxu0
    %v115 = vadd.f32 %v93, %v114
    %116 = vdwg.mxu0
    %117 = vmatpush.msra.mxu0 %v90
    %118 = vmatpush.msra.mxu0 %v88
    %119 = vmatpush.msra.mxu0 %v86
    %120 = vmatpush.msra.mxu0 %v84
    %121 = vmatpush.msra.mxu0 %v82
    %122 = vmatpush.msra.mxu0 %v80
    %123 = vmatpush.msra.mxu0 %v78
    %124 = vmatpush.msra.mxu0 %v76
    %125 = vmatpush.msra.mxu0 %v74
    %126 = vmatpush.msra.mxu0 %v72
    %127 = vmatpush.msra.mxu0 %v70
    %128 = vmatpush.msra.mxu0 %v68
    %129 = vmatpush.msra.mxu0 %v66
    %130 = vmatpush.msra.mxu0 %v64
    %131 = vmatpush.msra.mxu0 %v62
    %132 = vmatpush.msra.mxu0 %v60
    %133 = vmatmul.f32.gmra.mxu0 %v58
    %v134 = vpop.f32.mrf.mxu0
    %v135 = vadd.f32 %v94, %v134
    %136 = vdwg.mxu0
    %137 = vst [vmem:[#allocation8] sm:$0xff] %v115
    %138 = vst [vmem:[#allocation8 + $0x8] sm:$0xff] %v135
    // Predicated region
    $region26: #{tpu_custom_call.1} parent=1 // pred_check
      _
    $region27: #{tpu_custom_call.1} parent=1 // pred_check_branch
      %140 = sbr.rel (0) target = $region29
    $region28: #{tpu_custom_call.1} parent=1 // pred_region
      %142 = vsyncadd [#allocation4], 0
      %s144 = sshll.u32 [#allocation8], 4
      %s145 = int_to_ptr.vmem [resolvable:$true] %s144
      %s146 = sshll.u32 %s3, 4
      %s147 = int_to_ptr.hbm [resolvable:$true] %s146
      %149 = dma.vmem_to_hbm [thread:$0]  %s145, 256, %s147, [#allocation4]
    $region29: #{tpu_custom_call.1} parent=1 // pred_fallthru
      _
    // Predicated region
    $region30: #{tpu_custom_call.1} parent=1 // pred_check
      _
    $region31: #{tpu_custom_call.1} parent=1 // pred_check_branch
      %151 = sbr.rel (0) target = $region33
    $region32: #{tpu_custom_call.1} parent=1 // pred_region
      %153 = dma.done [#allocation4], 256
    $region33: #{tpu_custom_call.1} parent=1 // pred_fallthru
      _
    %154 = vsyncpa [#allocation3], 1
    %155 = vsyncpa [#allocation6], 1
    %156 = vsyncpa [#allocation4], 1

</llo_original>
